<compile_context>
chip_gen: v5e
topology: v5e:2x2
jax: 0.10.0
libtpu: 0.0.40
codegen_flags: <defaults>
</compile_context>

<pallas_src>
import jax
import jax.numpy as jnp
from jax.experimental import pallas as pl
from jax.experimental.pallas import tpu as pltpu


def _leaky_integrator_kernel(scale_ref, x_ref, o_ref):
    # out = x * (1 - 1/tau).  scale lives in SMEM (scalar prefetch); one
    # broadcast hoisted out of the loop + one VPU multiply per vreg.
    scale = scale_ref[0]
    o_ref[...] = (x_ref[...] * scale).astype(o_ref.dtype)


def leaky_integrator(
    x,
    tau=0.5,
    *,
    target_block_bytes=8 << 20,     # ~8 MiB blocks: amortizes ~0.35us/step overhead
    vmem_limit_bytes=48 << 20,      # 4 x 8 MiB pipelined buffers + headroom; <64 MiB (v7x)
    donate_input=False,             # set True only if caller no longer needs x
):
    """Pallas TPU implementation of LeakyIntegrator.forward.

    x: jnp.ndarray of any shape (elementwise op); NCHW in the PyTorch module.
    tau: time constant (Python float or traced scalar; must be != 0).
    """
    orig_shape = x.shape
    orig_dtype = x.dtype
    total = x.size
    itemsize = jnp.dtype(orig_dtype).itemsize

    # Runtime scalar: avoids recompiling for every distinct tau value.
    scale = jnp.asarray(1.0 - 1.0 / tau, dtype=jnp.float32).reshape(1)

    flat = x.reshape(-1)

    # Lane-dense slab: largest lane width (multiple of 128) dividing x.size,
    # so no pad/slice HBM round trip is needed.
    lanes = next((c for c in (1024, 512, 256, 128) if total % c == 0), None)
    padded = False
    if lanes is None:
        # Rare fallback: pad at most 127 elements to reach a multiple of 128.
        lanes = 128
        pad = (-total) % lanes
        flat = jnp.pad(flat, (0, pad))
        padded = True
    rows = flat.size // lanes
    x2d = flat.reshape(rows, lanes)

    # Block of ~target_block_bytes (rows a multiple of 8); the last grid block
    # may be ragged — Pallas masks the partial elementwise write.  For small
    # inputs the block covers the whole array (full-dim blocks satisfy the
    # (8, 128) rule).
    block_rows = max(8, (target_block_bytes // (lanes * itemsize)) // 8 * 8)
    block_rows = min(block_rows, rows)
    n_blocks = pl.cdiv(rows, block_rows)

    cost = pl.CostEstimate(
        flops=total,
        transcendentals=0,
        bytes_accessed=2 * total * itemsize,
    )

    kwargs = {}
    if donate_input:
        # Operand 0 is the prefetched scale; operand 1 is x2d.
        kwargs["input_output_aliases"] = {1: 0}

    out2d = pl.pallas_call(
        _leaky_integrator_kernel,
        out_shape=jax.ShapeDtypeStruct((rows, lanes), orig_dtype),
        grid_spec=pltpu.PrefetchScalarGridSpec(
            num_scalar_prefetch=1,
            grid=(n_blocks,),
            in_specs=[pl.BlockSpec((block_rows, lanes), lambda i, scale_ref: (i, 0))],
            out_specs=pl.BlockSpec((block_rows, lanes), lambda i, scale_ref: (i, 0)),
        ),
        compiler_params=pltpu.CompilerParams(
            # Blocks are independent: allow cross-TensorCore sharding (v7x).
            dimension_semantics=("parallel",),
            vmem_limit_bytes=vmem_limit_bytes,
        ),
        cost_estimate=cost,
        **kwargs,
    )(scale, x2d)

    if padded:
        return out2d.reshape(-1)[:total].reshape(orig_shape)
    return out2d.reshape(orig_shape)


if __name__ == "__main__":
    key = jax.random.PRNGKey(0)
    # Small NCHW input consistent with the module's expected usage.
    x = jax.random.normal(key, (2, 4, 16, 16), dtype=jnp.float32)

    tau = 0.5
    out = leaky_integrator(x, tau=tau)
    out = jax.block_until_ready(out)

    # Reference check against the exact PyTorch math (x + (-x / tau)).
    ref = x + (-x / tau)
    assert out.shape == x.shape
    assert out.dtype == x.dtype
    assert jnp.allclose(out, ref, atol=1e-6, rtol=1e-6)

    print("KERNEL_OK")
</pallas_src>

<mosaic_0001>
module attributes {stable_mosaic.version = 11 : i64} {
  func.func @_leaky_integrator_kernel(%arg0: i32, %arg1: memref<1xf32, #tpu.memory_space<smem>>, %arg2: memref<2x1024xf32, #tpu.memory_space<vmem>>, %arg3: memref<2x1024xf32, #tpu.memory_space<vmem>>) attributes {dimension_semantics = [#tpu.dimension_semantics<parallel>], iteration_bounds = array<i64: 1>, scalar_prefetch = 1 : i64, scratch_operands = 0 : i64, tpu.core_type = #tpu.core_type<tc>, window_params = [{transform_indices = @transform_0, window_bounds = array<i64: 2, 1024>}, {transform_indices = @transform_1, window_bounds = array<i64: 2, 1024>}]} {
    %c0 = arith.constant 0 : index
    %0 = memref.load %arg1[%c0] : memref<1xf32, #tpu.memory_space<smem>>
    %c0_0 = arith.constant 0 : index
    %c0_1 = arith.constant 0 : index
    %1 = vector.load %arg2[%c0_0, %c0_1] : memref<2x1024xf32, #tpu.memory_space<vmem>>, vector<2x1024xf32>
    %2 = vector.broadcast %0 : f32 to vector<2x1024xf32>
    %3 = arith.mulf %1, %2 : vector<2x1024xf32>
    %c0_2 = arith.constant 0 : index
    %c0_3 = arith.constant 0 : index
    %4 = vector.load %arg3[%c0_2, %c0_3] : memref<2x1024xf32, #tpu.memory_space<vmem>>, vector<2x1024xf32>
    tpu.vector_store %arg3[%c0_2, %c0_3], %3 {strides = array<i32>} : memref<2x1024xf32, #tpu.memory_space<vmem>>, vector<2x1024xf32>,
    return
  }
  func.func @transform_0(%arg0: i32, %arg1: memref<1xf32, #tpu.memory_space<smem>>) -> (i32, i32) {
    %c0_i32 = arith.constant 0 : i32
    %c0_i32_0 = arith.constant 0 : i32
    return %arg0, %c0_i32 : i32, i32
  }
  func.func @transform_1(%arg0: i32, %arg1: memref<1xf32, #tpu.memory_space<smem>>) -> (i32, i32) {
    %c0_i32 = arith.constant 0 : i32
    %c0_i32_0 = arith.constant 0 : i32
    return %arg0, %c0_i32 : i32, i32
  }
}

</mosaic_0001>

<llo_original>
// kernel: tpu_custom_call.1
$region0: #{tpu_custom_call.1}
  #allocation0 [shape = 'u32[]', space=smem, size = 0x4, offset = 0x4, fixed_abs, tag = 'smem constant byte address 0x4 - core index']
  #allocation1 [shape = 'u32[72,128]{1,0:T(1,128)}', space=vmem, size = 0x9000, scoped, tag = 'internal scratch']
  #allocation2 [shape = 's32[1]{0}', space=sflag, size = 0x4, scoped, tag = 'scoped memory for tpu_custom_call.1']
  #allocation3 [shape = 'f32[1]{0:T(128)S(6)}', space=smem, size = 0x200, scoped, tag = 'prefetched SMEM operand 0']
  %s0 = inlined_call_operand.<no memory space> [shape: f32[1], index: 0, kind: input, shape index: {}]
  %s1 = inlined_call_operand.hbm [shape: f32[2,1024], index: 1, kind: input, shape index: {}]
  %s2 = inlined_call_operand.hbm [shape: f32[2,1024], index: 2, kind: output, shape index: {}]
  %s3 = sld [smem:[#allocation0]]
  $region18: #{tpu_custom_call.1} parent=0
    _
  %s5 = ssub.s32 1, %s3
  %s6 = scalar_select 0, %s5, %s3
  %7 = sst [smem:[#allocation3]] %s0
  $region1: #{tpu_custom_call.1} parent=0
    #allocation4 [shape = 'u8[8192]{0}', space=vmem, size = 0x2000, scoped, tag = 'input window, operand 1, single buffered']
    #allocation5 [shape = 's32[1]{0}', space=sflag, size = 0x4, scoped, tag = 'scoped memory for tpu_custom_call.1']
    #allocation6 [shape = 's32[1]{0}', space=sflag, size = 0x4, scoped, tag = 'scoped memory for tpu_custom_call.1']
    #allocation7 [shape = 'u8[8192]{0}', space=vmem, size = 0x2000, scoped, tag = 'output window, operand 0, single buffered']
    %8 = vsyncpa [#allocation5], 0
    %9 = vsyncpa [#allocation6], 0
    // Predicated region
    $region2: #{tpu_custom_call.1} parent=1 // pred_check
      _
    $region3: #{tpu_custom_call.1} parent=1 // pred_check_branch
      %11 = sbr.rel (0) target = $region5
    $region4: #{tpu_custom_call.1} parent=1 // pred_region
      %13 = vsyncadd [#allocation5], 0
      %s15 = sshll.u32 %s1, 4
      %s16 = int_to_ptr.hbm [resolvable:$true] %s15
      %s17 = sshll.u32 [#allocation4], 4
      %s18 = int_to_ptr.vmem [resolvable:$true] %s17
      %20 = dma.hbm_to_vmem [thread:$0]  %s16, 256, %s18, [#allocation5]
    $region5: #{tpu_custom_call.1} parent=1 // pred_fallthru
      _
    // Predicated region
    $region6: #{tpu_custom_call.1} parent=1 // pred_check
      _
    $region7: #{tpu_custom_call.1} parent=1 // pred_check_branch
      %22 = sbr.rel (0) target = $region9
    $region8: #{tpu_custom_call.1} parent=1 // pred_region
      %24 = dma.done [#allocation5], 256
    $region9: #{tpu_custom_call.1} parent=1 // pred_fallthru
      _
    %s25 = sld [smem:[#allocation3]]
    %v26 = vld [vmem:[#allocation4] sm:$0xff]
    %v27 = vld [vmem:[#allocation4 + $0x8] sm:$0xff]
    %v28 = vstv %s25
    %v29 = vmul.f32 %v26, %v28
    %v30 = vmul.f32 %v27, %v28
    %31 = vst [vmem:[#allocation7] sm:$0xff] %v29
    %32 = vst [vmem:[#allocation7 + $0x8] sm:$0xff] %v30
    // Predicated region
    $region10: #{tpu_custom_call.1} parent=1 // pred_check
      _
    $region11: #{tpu_custom_call.1} parent=1 // pred_check_branch
      %34 = sbr.rel (0) target = $region13
    $region12: #{tpu_custom_call.1} parent=1 // pred_region
      %36 = vsyncadd [#allocation6], 0
      %s38 = sshll.u32 [#allocation7], 4
      %s39 = int_to_ptr.vmem [resolvable:$true] %s38
      %s40 = sshll.u32 %s2, 4
      %s41 = int_to_ptr.hbm [resolvable:$true] %s40
      %43 = dma.vmem_to_hbm [thread:$0]  %s39, 256, %s41, [#allocation6]
    $region13: #{tpu_custom_call.1} parent=1 // pred_fallthru
      _
    // Predicated region
    $region14: #{tpu_custom_call.1} parent=1 // pred_check
      _
    $region15: #{tpu_custom_call.1} parent=1 // pred_check_branch
      %45 = sbr.rel (0) target = $region17
    $region16: #{tpu_custom_call.1} parent=1 // pred_region
      %47 = dma.done [#allocation6], 256
    $region17: #{tpu_custom_call.1} parent=1 // pred_fallthru
      _
    %48 = vsyncpa [#allocation5], 1
    %49 = vsyncpa [#allocation6], 1

</llo_original>
